<compile_context>
chip_gen: v6e
topology: v6e:2x2x1
jax: 0.10.0
libtpu: 0.0.40
codegen_flags: <defaults>
</compile_context>

<pallas_src>
import jax
import jax.numpy as jnp
from jax.experimental import pallas as pl
from jax.experimental.pallas import tpu as pltpu

LANES = 128
# Budget for the double-buffered OUTPUT tiles.  Conservative enough for every
# generation's scoped-VMEM default (v5e 16 MiB, v6e/v7x 32 MiB).
_VMEM_OUT_TILE_BUDGET = 12 * 1024 * 1024


def _cdiv(a: int, b: int) -> int:
    return -(-a // b)


# --------------------------------------------------------------------------
# Kernels
# --------------------------------------------------------------------------
def _packed_kernel(xp_ref, e_ref, bt_ref, o_ref):
    """Lane-dense path (size < 128, 128 % size == 0).

    xp_ref: (tbg, group)  f32 -- `group` x-scalars per packed output row
    e_ref : (group, 128)  f32 -- block-diag expansion, E[g, g*size+j] = W[j,0]/size
    bt_ref: (1, 128)      f32 -- bias tiled `group` times along lanes
    o_ref : (tbg, 128)        -- packed output; packed[r, g*size+j] = out[r*group+g, j]
    """
    o_ref[...] = (
        jnp.dot(xp_ref[...], e_ref[...], preferred_element_type=jnp.float32)
        + bt_ref[...]
    ).astype(o_ref.dtype)


def _rowwise_kernel(x_ref, w_ref, b_ref, o_ref):
    """Generic fallback path.

    x_ref: (tb, 1), w_ref/b_ref: (1, size) (weight pre-scaled by 1/size),
    o_ref: (tb, size)
    """
    o_ref[...] = (x_ref[...] * w_ref[...] + b_ref[...]).astype(o_ref.dtype)


# --------------------------------------------------------------------------
# Wrappers
# --------------------------------------------------------------------------
def _forward_packed(xf, w_scaled, b_flat, size, max_tile_rows):
    B = xf.shape[0]
    group = LANES // size
    rows = _cdiv(B, group)               # packed rows needed
    total = rows * group
    if total != B:                       # tiny pad to a multiple of `group`
        xf = jnp.pad(xf, (0, total - B))
    xp = xf.reshape(rows, group)

    # Tile rows: as large as possible within the double-buffered VMEM budget.
    cap = _VMEM_OUT_TILE_BUDGET // (2 * LANES * 4)
    tbg = min(max_tile_rows, cap)
    if rows <= tbg:
        tbg = rows                       # single tile == full extent
    else:
        tbg = max(8, (tbg // 8) * 8)     # blocked second-to-last dim: /8
    grid = (pl.cdiv(rows, tbg),)         # ragged last block handled by Pallas

    # Block-diagonal expansion matrix (weight pre-scaled by 1/size) and
    # lane-tiled bias; both stay resident in VMEM across the whole grid.
    E = jnp.kron(jnp.eye(group, dtype=jnp.float32), w_scaled.reshape(1, size))
    bt = jnp.tile(b_flat, group).reshape(1, LANES)

    out_packed = pl.pallas_call(
        _packed_kernel,
        out_shape=jax.ShapeDtypeStruct((rows, LANES), jnp.float32),
        grid=grid,
        in_specs=[
            pl.BlockSpec((tbg, group), lambda i: (i, 0)),
            pl.BlockSpec((group, LANES), lambda i: (0, 0)),   # resident
            pl.BlockSpec((1, LANES), lambda i: (0, 0)),       # resident
        ],
        out_specs=pl.BlockSpec((tbg, LANES), lambda i: (i, 0)),
        compiler_params=pltpu.CompilerParams(
            dimension_semantics=("parallel",)),
    )(xp, E, bt)

    out = out_packed.reshape(rows * group, size)   # free row-major bitcast
    return out[:B] if total != B else out


def _forward_rowwise(xf, w_scaled, b_flat, size, max_tile_rows):
    B = xf.shape[0]
    row_bytes = (size + LANES) * 4       # out row + lane-padded x column
    cap = max(8, _VMEM_OUT_TILE_BUDGET // (2 * row_bytes))
    tb = min(max_tile_rows, cap)
    if B <= tb:
        tb = B
    else:
        tb = max(8, (tb // 8) * 8)
    grid = (pl.cdiv(B, tb),)

    x2 = xf.reshape(B, 1)
    w2 = w_scaled.reshape(1, size)
    b2 = b_flat.reshape(1, size)

    out = pl.pallas_call(
        _rowwise_kernel,
        out_shape=jax.ShapeDtypeStruct((B, size), jnp.float32),
        grid=grid,
        in_specs=[
            pl.BlockSpec((tb, 1), lambda i: (i, 0)),
            pl.BlockSpec((1, size), lambda i: (0, 0)),        # resident
            pl.BlockSpec((1, size), lambda i: (0, 0)),        # resident
        ],
        out_specs=pl.BlockSpec((tb, size), lambda i: (i, 0)),
        compiler_params=pltpu.CompilerParams(
            dimension_semantics=("parallel",)),
    )(x2, w2, b2)
    return out


def learnable_embedding(x, weight, bias, size, *, max_tile_rows=8192):
    """Forward of LearnableEmbedding.

    x: (B,) any numeric dtype; weight: (size, 1) f32; bias: (size,) f32.
    Returns (B, size) f32 with out[b, j] = (x[b] / size) * weight[j, 0] + bias[j].
    """
    B = x.shape[0]
    xf = x.reshape(B).astype(jnp.float32)
    # Fold the constant 1/size into the weight on the host: one fewer VPU
    # multiply per output vreg inside the kernel.
    w_scaled = weight.reshape(size).astype(jnp.float32) * jnp.float32(1.0 / size)
    b_flat = bias.reshape(size).astype(jnp.float32)

    if size < LANES and LANES % size == 0:
        return _forward_packed(xf, w_scaled, b_flat, size, max_tile_rows)
    return _forward_rowwise(xf, w_scaled, b_flat, size, max_tile_rows)


# --------------------------------------------------------------------------
# Demo / self-check
# --------------------------------------------------------------------------
if __name__ == "__main__":
    key = jax.random.PRNGKey(0)
    k_x, k_w, k_b = jax.random.split(key, 3)

    size = 32
    batch = 8

    # nn.Linear(1, size) parameter shapes; PyTorch default init is
    # U(-1/sqrt(fan_in), 1/sqrt(fan_in)) with fan_in=1 -> U(-1, 1).
    weight = jax.random.uniform(k_w, (size, 1), jnp.float32, minval=-1.0, maxval=1.0)
    bias = jax.random.uniform(k_b, (size,), jnp.float32, minval=-1.0, maxval=1.0)

    # Timestep-like integer inputs, shape (batch,)
    x = jax.random.randint(k_x, (batch,), 0, 100, dtype=jnp.int32)

    out = jax.block_until_ready(learnable_embedding(x, weight, bias, size))

    # Reference in plain JAX (same math as the PyTorch module).
    ref = (x.astype(jnp.float32)[:, None] / size) @ weight.T + bias[None, :]
    assert out.shape == (batch, size)
    assert jnp.allclose(out, ref, atol=1e-5, rtol=1e-5), "mismatch vs reference"

    # Multi-tile path with a ragged last block: rows=250, tile=64 -> grid=(4,).
    x_big = jax.random.randint(k_x, (1000,), 0, 100, dtype=jnp.int32)
    out_big = jax.block_until_ready(
        learnable_embedding(x_big, weight, bias, size, max_tile_rows=64))
    ref_big = (x_big.astype(jnp.float32)[:, None] / size) @ weight.T + bias[None, :]
    assert out_big.shape == (1000, size)
    assert jnp.allclose(out_big, ref_big, atol=1e-5, rtol=1e-5), "tiled mismatch"

    # Non-group-aligned batch exercises the tiny tail pad / final slice.
    x_odd = jax.random.randint(k_x, (10,), 0, 100, dtype=jnp.int32)
    out_odd = jax.block_until_ready(learnable_embedding(x_odd, weight, bias, size))
    ref_odd = (x_odd.astype(jnp.float32)[:, None] / size) @ weight.T + bias[None, :]
    assert out_odd.shape == (10, size)
    assert jnp.allclose(out_odd, ref_odd, atol=1e-5, rtol=1e-5), "tail mismatch"

    print("KERNEL_OK")
</pallas_src>

<mosaic_0001>
module attributes {stable_mosaic.version = 11 : i64} {
  func.func @_packed_kernel(%arg0: i32, %arg1: memref<2x4xf32, #tpu.memory_space<vmem>>, %arg2: memref<4x128xf32, #tpu.memory_space<vmem>>, %arg3: memref<1x128xf32, #tpu.memory_space<vmem>>, %arg4: memref<2x128xf32, #tpu.memory_space<vmem>>) attributes {dimension_semantics = [#tpu.dimension_semantics<parallel>], iteration_bounds = array<i64: 1>, scalar_prefetch = 0 : i64, scratch_operands = 0 : i64, tpu.core_type = #tpu.core_type<tc>, window_params = [{transform_indices = @transform_0, window_bounds = array<i64: 2, 4>}, {pipeline_mode = #tpu.pipeline_mode<synchronous>, transform_indices = @transform_1, window_bounds = array<i64: 4, 128>}, {pipeline_mode = #tpu.pipeline_mode<synchronous>, transform_indices = @transform_2, window_bounds = array<i64: 1, 128>}, {transform_indices = @transform_3, window_bounds = array<i64: 2, 128>}]} {
    %c0 = arith.constant 0 : index
    %c0_0 = arith.constant 0 : index
    %0 = vector.load %arg1[%c0, %c0_0] : memref<2x4xf32, #tpu.memory_space<vmem>>, vector<2x4xf32>
    %c0_1 = arith.constant 0 : index
    %c0_2 = arith.constant 0 : index
    %1 = vector.load %arg2[%c0_1, %c0_2] : memref<4x128xf32, #tpu.memory_space<vmem>>, vector<4x128xf32>
    %cst = arith.constant dense<0.000000e+00> : vector<2x128xf32>
    %2 = tpu.matmul %0, %1, %cst {dimension_numbers = #tpu.dot_dimension_numbers<[1], [0], [0], [1], [0, 0, 1, 1], [], []>} : vector<2x4xf32>, vector<4x128xf32>, vector<2x128xf32> -> vector<2x128xf32>
    %c0_3 = arith.constant 0 : index
    %c0_4 = arith.constant 0 : index
    %3 = vector.load %arg3[%c0_3, %c0_4] : memref<1x128xf32, #tpu.memory_space<vmem>>, vector<1x128xf32>
    %4 = vector.broadcast %3 : vector<1x128xf32> to vector<2x128xf32>
    %5 = arith.addf %2, %4 : vector<2x128xf32>
    %c0_5 = arith.constant 0 : index
    %c0_6 = arith.constant 0 : index
    %6 = vector.load %arg4[%c0_5, %c0_6] : memref<2x128xf32, #tpu.memory_space<vmem>>, vector<2x128xf32>
    tpu.vector_store %arg4[%c0_5, %c0_6], %5 {strides = array<i32>} : memref<2x128xf32, #tpu.memory_space<vmem>>, vector<2x128xf32>,
    return
  }
  func.func @transform_0(%arg0: i32) -> (i32, i32) {
    %c0_i32 = arith.constant 0 : i32
    %c0_i32_0 = arith.constant 0 : i32
    return %arg0, %c0_i32 : i32, i32
  }
  func.func @transform_1(%arg0: i32) -> (i32, i32) {
    %c0_i32 = arith.constant 0 : i32
    %c0_i32_0 = arith.constant 0 : i32
    %c0_i32_1 = arith.constant 0 : i32
    return %c0_i32, %c0_i32_0 : i32, i32
  }
  func.func @transform_2(%arg0: i32) -> (i32, i32) {
    %c0_i32 = arith.constant 0 : i32
    %c0_i32_0 = arith.constant 0 : i32
    %c0_i32_1 = arith.constant 0 : i32
    return %c0_i32, %c0_i32_0 : i32, i32
  }
  func.func @transform_3(%arg0: i32) -> (i32, i32) {
    %c0_i32 = arith.constant 0 : i32
    %c0_i32_0 = arith.constant 0 : i32
    return %arg0, %c0_i32 : i32, i32
  }
}

</mosaic_0001>

<llo_original>
// kernel: tpu_custom_call.1
$region0: #{tpu_custom_call.1}
  #allocation0 [shape = 'u32[]', space=smem, size = 0x4, offset = 0x4, fixed_abs, tag = 'smem constant byte address 0x4 - core index']
  #allocation1 [shape = 'u32[144,128]{1,0:T(1,128)}', space=vmem, size = 0x12000, scoped, tag = 'internal scratch']
  %s0 = inlined_call_operand.hbm [shape: f32[2,4], index: 0, kind: input, shape index: {}]
  %s1 = inlined_call_operand.hbm [shape: f32[4,128], index: 1, kind: input, shape index: {}]
  %s2 = inlined_call_operand.vmem [shape: f32[1,128], index: 2, kind: input, shape index: {}]
  %s3 = inlined_call_operand.hbm [shape: f32[2,128], index: 3, kind: output, shape index: {}]
  %s4 = sld [smem:[#allocation0]]
  $region30: #{tpu_custom_call.1} parent=0
    _
  %s6 = ssub.s32 1, %s4
  %s7 = scalar_select 0, %s6, %s4
  $region1: #{tpu_custom_call.1} parent=0
    #allocation2 [shape = 'u8[1024]{0}', space=vmem, size = 0x400, scoped, tag = 'input window, operand 0, single buffered']
    #allocation3 [shape = 's32[1]{0}', space=sflag, size = 0x4, scoped, tag = 'scoped memory for tpu_custom_call.1']
    #allocation4 [shape = 's32[1]{0}', space=sflag, size = 0x4, scoped, tag = 'scoped memory for tpu_custom_call.1']
    #allocation5 [shape = 'u8[2048]{0}', space=vmem, size = 0x800, scoped, tag = 'input window, operand 1, single buffered']
    #allocation6 [shape = 's32[1]{0}', space=sflag, size = 0x4, scoped, tag = 'scoped memory for tpu_custom_call.1']
    #allocation7 [shape = 'u8[1024]{0}', space=vmem, size = 0x400, scoped, tag = 'output window, operand 0, single buffered']
    %8 = vsyncpa [#allocation3], 0
    %9 = vsyncpa [#allocation6], 0
    %10 = vsyncpa [#allocation4], 0
    // Predicated region
    $region2: #{tpu_custom_call.1} parent=1 // pred_check
      _
    $region3: #{tpu_custom_call.1} parent=1 // pred_check_branch
      %12 = sbr.rel (0) target = $region5
    $region4: #{tpu_custom_call.1} parent=1 // pred_region
      %s14 = ssub.s32 32, 32
      %15 = vsyncadd [#allocation3], %s14
      %s17 = sshll.u32 [#allocation2], 4
      %s18 = int_to_ptr.vmem [resolvable:$true] %s17
      %20 = dma.hbm_to_vmem [thread:$0]  %s0, 32, %s18, [#allocation3]
    $region5: #{tpu_custom_call.1} parent=1 // pred_fallthru
      _
    // Predicated region
    $region6: #{tpu_custom_call.1} parent=1 // pred_check
      _
    $region7: #{tpu_custom_call.1} parent=1 // pred_check_branch
      %22 = sbr.rel (0) target = $region9
    $region8: #{tpu_custom_call.1} parent=1 // pred_region
      %s24 = ssub.s32 64, 64
      %25 = vsyncadd [#allocation6], %s24
      %s27 = sshll.u32 [#allocation5], 4
      %s28 = int_to_ptr.vmem [resolvable:$true] %s27
      %30 = dma.hbm_to_vmem [thread:$0]  %s1, 64, %s28, [#allocation6]
    $region9: #{tpu_custom_call.1} parent=1 // pred_fallthru
      _
    // Predicated region
    $region10: #{tpu_custom_call.1} parent=1 // pred_check
      _
    $region11: #{tpu_custom_call.1} parent=1 // pred_check_branch
      %32 = sbr.rel (0) target = $region13
    $region12: #{tpu_custom_call.1} parent=1 // pred_region
      _
    $region13: #{tpu_custom_call.1} parent=1 // pred_fallthru
      _
    // Predicated region
    $region14: #{tpu_custom_call.1} parent=1 // pred_check
      _
    $region15: #{tpu_custom_call.1} parent=1 // pred_check_branch
      %34 = sbr.rel (0) target = $region17
    $region16: #{tpu_custom_call.1} parent=1 // pred_region
      %35 = dma.done [#allocation3], 32
    $region17: #{tpu_custom_call.1} parent=1 // pred_fallthru
      _
    // Predicated region
    $region18: #{tpu_custom_call.1} parent=1 // pred_check
      _
    $region19: #{tpu_custom_call.1} parent=1 // pred_check_branch
      %37 = sbr.rel (0) target = $region21
    $region20: #{tpu_custom_call.1} parent=1 // pred_region
      %38 = dma.done [#allocation6], 64
    $region21: #{tpu_custom_call.1} parent=1 // pred_fallthru
      _
    %v39 = vld [vmem:[#allocation2] sm:$0x3]
    %v40 = vld [vmem:[#allocation5] sm:$0xf]
    %v41 = vld [vmem:[%s2] sm:$0x1]
    %v43 = vlaneseq
    %v44 = vshrl.u32 %v43, 7
    %v45 = vsub.s32 0, %v44
    %v46 = vrot.slane %v41, %v45
    %vm48 = vcmask 31744
    %v50 = vsel %vm48, %v39, 0
    %vm52 = vcmask 1043456
    %v54 = vsel %vm52, %v40, 0
    %56 = vmatprep.subr.mxu0 0.0
    %57 = vmatpush1.msra.mxu0 0.0
    %58 = vmatprep.subr.mxu0 0.0
    %59 = vmatpush1.msra.mxu0 0.0
    %60 = vmatprep.subr.mxu0 0.0
    %61 = vmatpush1.msra.mxu0 0.0
    %62 = vmatprep.subr.mxu0 0.0
    %63 = vmatpush1.msra.mxu0 0.0
    %64 = vmatprep.subr.mxu0 0.0
    %65 = vmatpush1.msra.mxu0 0.0
    %66 = vmatprep.subr.mxu0 0.0
    %67 = vmatpush1.msra.mxu0 0.0
    %68 = vmatprep.subr.mxu0 0.0
    %69 = vmatpush1.msra.mxu0 0.0
    %70 = vmatprep.subr.mxu0 0.0
    %71 = vmatpush1.msra.mxu0 0.0
    %72 = vmatprep.subr.mxu0 0.0
    %73 = vmatpush1.msra.mxu0 0.0
    %74 = vmatprep.subr.mxu0 0.0
    %75 = vmatpush1.msra.mxu0 0.0
    %76 = vmatprep.subr.mxu0 0.0
    %77 = vmatpush1.msra.mxu0 0.0
    %78 = vmatprep.subr.mxu0 0.0
    %79 = vmatpush1.msra.mxu0 0.0
    %80 = vmatprep.subr.mxu0 0.0
    %81 = vmatpush1.msra.mxu0 0.0
    %82 = vmatprep.subr.mxu0 0.0
    %83 = vmatpush1.msra.mxu0 0.0
    %84 = vmatprep.subr.mxu0 0.0
    %85 = vmatpush1.msra.mxu0 0.0
    %86 = vmatprep.subr.mxu0 0.0
    %87 = vmatpush1.msra.mxu0 %v54
    %88 = vmatprep.subr.mxu0 0.0
    %89 = vmatpush2.msra.mxu0 0.0
    %90 = vmatprep.subr.mxu0 0.0
    %91 = vmatpush2.msra.mxu0 0.0
    %92 = vmatprep.subr.mxu0 0.0
    %93 = vmatpush2.msra.mxu0 0.0
    %94 = vmatprep.subr.mxu0 0.0
    %95 = vmatpush2.msra.mxu0 0.0
    %96 = vmatprep.subr.mxu0 0.0
    %97 = vmatpush2.msra.mxu0 0.0
    %98 = vmatprep.subr.mxu0 0.0
    %99 = vmatpush2.msra.mxu0 0.0
    %100 = vmatprep.subr.mxu0 0.0
    %101 = vmatpush2.msra.mxu0 0.0
    %102 = vmatprep.subr.mxu0 0.0
    %103 = vmatpush2.msra.mxu0 0.0
    %104 = vmatprep.subr.mxu0 0.0
    %105 = vmatpush2.msra.mxu0 0.0
    %106 = vmatprep.subr.mxu0 0.0
    %107 = vmatpush2.msra.mxu0 0.0
    %108 = vmatprep.subr.mxu0 0.0
    %109 = vmatpush2.msra.mxu0 0.0
    %110 = vmatprep.subr.mxu0 0.0
    %111 = vmatpush2.msra.mxu0 0.0
    %112 = vmatprep.subr.mxu0 0.0
    %113 = vmatpush2.msra.mxu0 0.0
    %114 = vmatprep.subr.mxu0 0.0
    %115 = vmatpush2.msra.mxu0 0.0
    %116 = vmatprep.subr.mxu0 0.0
    %117 = vmatpush2.msra.mxu0 0.0
    %118 = vmatprep.subr.mxu0 0.0
    %119 = vmatpush2.msra.mxu0 0.0
    %120 = vmatprep.mubr.f32.mxu0 0.0
    %121 = vmatmul.mubr.f32.gmra.mxu0 %v50
    %v122 = vpop.f32.mrf.mxu0
    %v123 = vadd.f32 %v46, %v122
    %v124 = vpop.f32.mrf.mxu0
    %125 = vdwg.mxu0
    %126 = vst [vmem:[#allocation7] sm:$0x3] %v123
    // Predicated region
    $region22: #{tpu_custom_call.1} parent=1 // pred_check
      _
    $region23: #{tpu_custom_call.1} parent=1 // pred_check_branch
      %128 = sbr.rel (0) target = $region25
    $region24: #{tpu_custom_call.1} parent=1 // pred_region
      %s130 = ssub.s32 32, 32
      %131 = vsyncadd [#allocation4], %s130
      %s133 = sshll.u32 [#allocation7], 4
      %s134 = int_to_ptr.vmem [resolvable:$true] %s133
      %136 = dma.vmem_to_hbm [thread:$0]  %s134, 32, %s3, [#allocation4]
    $region25: #{tpu_custom_call.1} parent=1 // pred_fallthru
      _
    // Predicated region
    $region26: #{tpu_custom_call.1} parent=1 // pred_check
      _
    $region27: #{tpu_custom_call.1} parent=1 // pred_check_branch
      %138 = sbr.rel (0) target = $region29
    $region28: #{tpu_custom_call.1} parent=1 // pred_region
      %139 = dma.done [#allocation4], 32
    $region29: #{tpu_custom_call.1} parent=1 // pred_fallthru
      _
    %140 = vsyncpa [#allocation3], 1
    %141 = vsyncpa [#allocation6], 1
    %142 = vsyncpa [#allocation4], 1

</llo_original>
